<compile_context>
chip_gen: v7x
topology: tpu7x:2x2x1
jax: 0.10.0
libtpu: 0.0.40
codegen_flags: <defaults>
</compile_context>

<pallas_src>
import functools

import jax
import jax.numpy as jnp
from jax.experimental import pallas as pl
from jax.experimental.pallas import tpu as pltpu

EPS = 1e-5


def _round_up(n, m):
    return ((n + m - 1) // m) * m


def _net_kernel(depth, num_trees, x_ref, wz_ref, b_ref, c_ref, ba_ref, out_ref):
    """One batch tile of the fused forward (batch on lanes).

    x_ref  : (F, Bt)        f32  input rows, transposed (batch on lanes)
    wz_ref : (NPAD, F)      f32  folded (Linear+BN+0.5*decision) weights, transposed
    b_ref  : (NPAD, 1)      f32  folded decision biases (column)
    c_ref  : (n_leaves*T,1) f32  leaf_value * w_agg, row = leaf*T + tree
    ba_ref : (1,)     SMEM  f32  aggregation bias
    out_ref: (1, Bt)        f32
    """
    T = num_trees
    n_leaves = 2 ** depth
    bt = x_ref.shape[1]

    # 1) all (compact) decision nodes at once:
    #    z = 0.5*((x@W_feat - mean)*rsqrt(var+eps) @ W_dec + b_dec)
    #    folded into (NPAD, F) @ (F, Bt) -> (NPAD, Bt).                [MXU bf16]
    z = jnp.dot(wz_ref[...].astype(jnp.bfloat16),
                x_ref[...].astype(jnp.bfloat16),
                preferred_element_type=jnp.float32) + b_ref[...]

    # 2) sigmoid via tanh: sigmoid(2z) = 0.5 + 0.5*tanh(z).            [EUP]
    half = 0.5 * jnp.tanh(z)
    sig = 0.5 + half          # branch probability for bit = 1
    neg = 0.5 - half          # branch probability for bit = 0

    # 3) soft routing: per-(leaf, tree) path probability weighted by
    #    leaf_value*w_agg, accumulated per tree (statically unrolled).  [VPU]
    acc = jnp.zeros((T, bt), jnp.float32)
    for leaf in range(n_leaves):
        node = 0
        p = None
        for lvl in range(depth):
            bit = (leaf >> (depth - 1 - lvl)) & 1
            src = sig if bit else neg
            f = src[node * T:(node + 1) * T, :]
            p = f if p is None else p * f
            node = 2 * node + 1 + bit
        acc = acc + p * c_ref[leaf * T:(leaf + 1) * T, :]

    # 4) sum over trees (sublane reduce) + aggregation bias.       [XLU+VPU]
    out_ref[...] = jnp.sum(acc, axis=0, keepdims=True) + ba_ref[0]


def net_forward(x, params, *, depth, num_trees, batch_tile=1024):
    """Full Net forward: stats+fold prologue (tiny, plain JAX) + tiled Pallas kernel."""
    B, F = x.shape
    T = num_trees
    n_leaves = 2 ** depth
    n_nodes = 2 ** depth - 1
    assert T % 8 == 0, "num_trees must be a multiple of 8 for sublane-aligned routing"

    x = x.astype(jnp.float32)
    w_feat = params["w_feat"].astype(jnp.float32)             # (F, H)
    w_dec = params["w_dec"].astype(jnp.float32)               # (H, n_nodes*T)
    b_dec = params["b_dec"].reshape(-1).astype(jnp.float32)   # (n_nodes*T,)

    # ---- pass 1: full-batch BatchNorm statistics, exactly, from input moments ----
    #      E[h] = E[x] @ W,  E[h_j^2] = w_j^T E[x x^T] w_j   (h = x @ W, no bias)
    inv_b = 1.0 / B
    mu_x = jnp.sum(x, axis=0) * inv_b                          # (F,)
    sxx = (x.T @ x) * inv_b                                    # (F, F)
    mean = mu_x @ w_feat                                       # (H,)
    ex2 = jnp.einsum('aj,ab,bj->j', w_feat, sxx, w_feat)       # (H,)
    var = jnp.maximum(ex2 - mean * mean, 0.0)                  # biased; clamped
    s = jax.lax.rsqrt(var + EPS)                               # (H,)

    # ---- fold Linear + BN + 0.5*(.) into one (F -> n_nodes*T) affine map ----
    #      0.5*((x@W_feat - mean)*s @ W_dec + b_dec) = x @ w_eff + b_eff
    w_eff = 0.5 * (w_feat @ (s[:, None] * w_dec))              # (F, n_nodes*T)
    b_eff = 0.5 * (b_dec - (mean * s) @ w_dec)                 # (n_nodes*T,)

    npad = _round_up(n_nodes * T, 8)
    wzT = jnp.zeros((npad, F), jnp.float32).at[:n_nodes * T, :].set(w_eff.T)
    bcol = jnp.zeros((npad, 1), jnp.float32).at[:n_nodes * T, 0].set(b_eff)

    c = (params["leaf"].astype(jnp.float32)
         * params["w_agg"].reshape(1, T).astype(jnp.float32)).reshape(-1, 1)
    b_agg = params["b_agg"].reshape(1,).astype(jnp.float32)

    # ---- pass 2: tiled, lane-dense forward (batch on lanes) ----
    # batch_tile=1024 fits v5e's 16 MiB scoped-VMEM default; sweep {512,1024,2048}.
    bt = min(_round_up(B, 128), _round_up(batch_tile, 128))
    b_pad = _round_up(B, bt)
    xT = jnp.zeros((F, b_pad), jnp.float32).at[:, :B].set(x.T)

    kernel = functools.partial(_net_kernel, depth, T)
    cost = pl.CostEstimate(
        flops=int(2 * npad * F * b_pad + 6 * npad * b_pad
                  + 5 * n_leaves * T * b_pad),
        transcendentals=int(npad * b_pad),
        bytes_accessed=int(4 * (F * b_pad + b_pad
                                + npad * (F + 1) + n_leaves * T + 1)),
    )

    out = pl.pallas_call(
        kernel,
        out_shape=jax.ShapeDtypeStruct((1, b_pad), jnp.float32),
        grid=(b_pad // bt,),
        in_specs=[
            pl.BlockSpec((F, bt), lambda i: (0, i)),             # x^T batch tile
            pl.BlockSpec((npad, F), lambda i: (0, 0)),           # folded weights (resident)
            pl.BlockSpec((npad, 1), lambda i: (0, 0)),           # folded biases  (resident)
            pl.BlockSpec((n_leaves * T, 1), lambda i: (0, 0)),   # leaf*w_agg     (resident)
            pl.BlockSpec(memory_space=pltpu.MemorySpace.SMEM),   # b_agg scalar
        ],
        out_specs=pl.BlockSpec((1, bt), lambda i: (0, i)),
        compiler_params=pltpu.CompilerParams(
            dimension_semantics=("parallel",),   # v7x: shard batch tiles over both TCs
        ),
        cost_estimate=cost,
    )(xT, wzT, bcol, c, b_agg)

    return out[0, :B].reshape(B, 1)


def init_params(key, *, in_features=8, hidden=100, num_trees=16, depth=3):
    n_nodes = 2 ** depth - 1
    n_leaves = 2 ** depth
    k = jax.random.split(key, 6)
    return {
        # Linear(8 -> 100, bias=False)
        "w_feat": jax.random.normal(k[0], (in_features, hidden), jnp.float32) * 0.1,
        # forest decision functions: node-major column layout (n_nodes * T)
        "w_dec": jax.random.normal(k[1], (hidden, n_nodes * num_trees), jnp.float32) * 0.1,
        "b_dec": jax.random.normal(k[2], (1, n_nodes * num_trees), jnp.float32) * 0.1,
        # per-tree scalar leaf values
        "leaf": jax.random.normal(k[3], (n_leaves, num_trees), jnp.float32) * 0.1,
        # Linear(numTrees -> 1)
        "w_agg": jax.random.normal(k[4], (num_trees, 1), jnp.float32) * 0.1,
        "b_agg": jax.random.normal(k[5], (1, 1), jnp.float32) * 0.1,
    }


def net_reference(x, params, *, depth, num_trees):
    """Pure-JAX f32 reference with the original (un-folded) formulation."""
    T = num_trees
    h = x @ params["w_feat"]
    mean = jnp.mean(h, axis=0, keepdims=True)
    var = jnp.mean((h - mean) ** 2, axis=0, keepdims=True)
    h = (h - mean) * jax.lax.rsqrt(var + EPS)
    d = jax.nn.sigmoid(h @ params["w_dec"] + params["b_dec"])
    n_leaves = 2 ** depth
    out = jnp.zeros((x.shape[0], T), jnp.float32)
    for leaf in range(n_leaves):
        p = jnp.ones((x.shape[0], T), jnp.float32)
        node = 0
        for lvl in range(depth):
            bit = (leaf >> (depth - 1 - lvl)) & 1
            dn = d[:, node * T:(node + 1) * T]
            p = p * (dn if bit else (1.0 - dn))
            node = 2 * node + 1 + bit
        out = out + p * params["leaf"][leaf:leaf + 1, :]
    return out @ params["w_agg"] + params["b_agg"]


if __name__ == "__main__":
    IN_FEATURES, HIDDEN = 8, 100
    NUM_TREES, DEPTH = 16, 3          # 2**3 leaves * 16 trees = 128 (leaf,tree) lanes
    TOL = 3e-3                        # bf16 MXU operands; f32 accumulation

    key = jax.random.PRNGKey(0)
    kx, kx2, kp = jax.random.split(key, 3)
    params = init_params(kp, in_features=IN_FEATURES, hidden=HIDDEN,
                         num_trees=NUM_TREES, depth=DEPTH)

    # Small batch: single grid step.
    x = jax.random.normal(kx, (8, IN_FEATURES), jnp.float32)
    y = net_forward(x, params, depth=DEPTH, num_trees=NUM_TREES)
    y = jax.block_until_ready(y)
    assert y.shape == (8, 1) and y.dtype == jnp.float32
    y_ref = net_reference(x, params, depth=DEPTH, num_trees=NUM_TREES)
    err = float(jnp.max(jnp.abs(y - y_ref)))
    assert err < TOL, f"mismatch vs reference (B=8): {err}"

    # Ragged batch: multiple grid steps + padding, exercises the batch grid.
    x2 = jax.random.normal(kx2, (333, IN_FEATURES), jnp.float32)
    y2 = net_forward(x2, params, depth=DEPTH, num_trees=NUM_TREES, batch_tile=128)
    y2 = jax.block_until_ready(y2)
    assert y2.shape == (333, 1) and y2.dtype == jnp.float32
    y2_ref = net_reference(x2, params, depth=DEPTH, num_trees=NUM_TREES)
    err2 = float(jnp.max(jnp.abs(y2 - y2_ref)))
    assert err2 < TOL, f"mismatch vs reference (B=333): {err2}"

    print("KERNEL_OK")
</pallas_src>

<mosaic_0001>
module attributes {stable_mosaic.version = 11 : i64} {
  func.func @_net_kernel(%arg0: i32, %arg1: memref<8x128xf32, #tpu.memory_space<vmem>>, %arg2: memref<112x8xf32, #tpu.memory_space<vmem>>, %arg3: memref<112x1xf32, #tpu.memory_space<vmem>>, %arg4: memref<128x1xf32, #tpu.memory_space<vmem>>, %arg5: memref<1xf32, #tpu.memory_space<smem>>, %arg6: memref<1x128xf32, #tpu.memory_space<vmem>>) attributes {dimension_semantics = [#tpu.dimension_semantics<parallel>], iteration_bounds = array<i64: 1>, scalar_prefetch = 0 : i64, scratch_operands = 0 : i64, tpu.core_type = #tpu.core_type<tc>, window_params = [{transform_indices = @transform_0, window_bounds = array<i64: 8, 128>}, {pipeline_mode = #tpu.pipeline_mode<synchronous>, transform_indices = @transform_1, window_bounds = array<i64: 112, 8>}, {pipeline_mode = #tpu.pipeline_mode<synchronous>, transform_indices = @transform_2, window_bounds = array<i64: 112, 1>}, {pipeline_mode = #tpu.pipeline_mode<synchronous>, transform_indices = @transform_3, window_bounds = array<i64: 128, 1>}, {transform_indices = @transform_4, window_bounds = array<i64: 1>}, {transform_indices = @transform_5, window_bounds = array<i64: 1, 128>}]} {
    %c0 = arith.constant 0 : index
    %c0_0 = arith.constant 0 : index
    %0 = vector.load %arg2[%c0, %c0_0] : memref<112x8xf32, #tpu.memory_space<vmem>>, vector<112x8xf32>
    %1 = arith.truncf %0 : vector<112x8xf32> to vector<112x8xbf16>
    %c0_1 = arith.constant 0 : index
    %c0_2 = arith.constant 0 : index
    %2 = vector.load %arg1[%c0_1, %c0_2] : memref<8x128xf32, #tpu.memory_space<vmem>>, vector<8x128xf32>
    %3 = arith.truncf %2 : vector<8x128xf32> to vector<8x128xbf16>
    %cst = arith.constant dense<0.000000e+00> : vector<112x128xf32>
    %4 = tpu.matmul %1, %3, %cst {dimension_numbers = #tpu.dot_dimension_numbers<[1], [0], [0], [1], [0, 0, 1, 1], [], []>} : vector<112x8xbf16>, vector<8x128xbf16>, vector<112x128xf32> -> vector<112x128xf32>
    %c0_3 = arith.constant 0 : index
    %c0_4 = arith.constant 0 : index
    %5 = vector.load %arg3[%c0_3, %c0_4] : memref<112x1xf32, #tpu.memory_space<vmem>>, vector<112x1xf32>
    %6 = vector.broadcast %5 : vector<112x1xf32> to vector<112x128xf32>
    %7 = arith.addf %4, %6 : vector<112x128xf32>
    %8 = math.tanh %7 : vector<112x128xf32>
    %cst_5 = arith.constant 5.000000e-01 : f32
    %9 = vector.broadcast %cst_5 : f32 to vector<112x128xf32>
    %10 = arith.mulf %9, %8 : vector<112x128xf32>
    %cst_6 = arith.constant 5.000000e-01 : f32
    %11 = vector.broadcast %cst_6 : f32 to vector<112x128xf32>
    %12 = arith.addf %11, %10 : vector<112x128xf32>
    %cst_7 = arith.constant 5.000000e-01 : f32
    %13 = vector.broadcast %cst_7 : f32 to vector<112x128xf32>
    %14 = arith.subf %13, %10 : vector<112x128xf32>
    %cst_8 = arith.constant 0.000000e+00 : f32
    %15 = vector.broadcast %cst_8 : f32 to vector<16x128xf32>
    %16 = vector.extract_strided_slice %14 {offsets = [0, 0], sizes = [16, 128], strides = [1, 1]} : vector<112x128xf32> to vector<16x128xf32>
    %17 = vector.extract_strided_slice %14 {offsets = [16, 0], sizes = [16, 128], strides = [1, 1]} : vector<112x128xf32> to vector<16x128xf32>
    %18 = arith.mulf %16, %17 : vector<16x128xf32>
    %19 = vector.extract_strided_slice %14 {offsets = [48, 0], sizes = [16, 128], strides = [1, 1]} : vector<112x128xf32> to vector<16x128xf32>
    %20 = arith.mulf %18, %19 : vector<16x128xf32>
    %c0_9 = arith.constant 0 : index
    %c0_10 = arith.constant 0 : index
    %21 = vector.load %arg4[%c0_9, %c0_10] : memref<128x1xf32, #tpu.memory_space<vmem>>, vector<16x1xf32>
    %22 = vector.broadcast %21 : vector<16x1xf32> to vector<16x128xf32>
    %23 = arith.mulf %20, %22 : vector<16x128xf32>
    %24 = arith.addf %15, %23 : vector<16x128xf32>
    %25 = vector.extract_strided_slice %14 {offsets = [0, 0], sizes = [16, 128], strides = [1, 1]} : vector<112x128xf32> to vector<16x128xf32>
    %26 = vector.extract_strided_slice %14 {offsets = [16, 0], sizes = [16, 128], strides = [1, 1]} : vector<112x128xf32> to vector<16x128xf32>
    %27 = arith.mulf %25, %26 : vector<16x128xf32>
    %28 = vector.extract_strided_slice %12 {offsets = [48, 0], sizes = [16, 128], strides = [1, 1]} : vector<112x128xf32> to vector<16x128xf32>
    %29 = arith.mulf %27, %28 : vector<16x128xf32>
    %c16 = arith.constant 16 : index
    %c0_11 = arith.constant 0 : index
    %30 = vector.load %arg4[%c16, %c0_11] : memref<128x1xf32, #tpu.memory_space<vmem>>, vector<16x1xf32>
    %31 = vector.broadcast %30 : vector<16x1xf32> to vector<16x128xf32>
    %32 = arith.mulf %29, %31 : vector<16x128xf32>
    %33 = arith.addf %24, %32 : vector<16x128xf32>
    %34 = vector.extract_strided_slice %14 {offsets = [0, 0], sizes = [16, 128], strides = [1, 1]} : vector<112x128xf32> to vector<16x128xf32>
    %35 = vector.extract_strided_slice %12 {offsets = [16, 0], sizes = [16, 128], strides = [1, 1]} : vector<112x128xf32> to vector<16x128xf32>
    %36 = arith.mulf %34, %35 : vector<16x128xf32>
    %37 = vector.extract_strided_slice %14 {offsets = [64, 0], sizes = [16, 128], strides = [1, 1]} : vector<112x128xf32> to vector<16x128xf32>
    %38 = arith.mulf %36, %37 : vector<16x128xf32>
    %c32 = arith.constant 32 : index
    %c0_12 = arith.constant 0 : index
    %39 = vector.load %arg4[%c32, %c0_12] : memref<128x1xf32, #tpu.memory_space<vmem>>, vector<16x1xf32>
    %40 = vector.broadcast %39 : vector<16x1xf32> to vector<16x128xf32>
    %41 = arith.mulf %38, %40 : vector<16x128xf32>
    %42 = arith.addf %33, %41 : vector<16x128xf32>
    %43 = vector.extract_strided_slice %14 {offsets = [0, 0], sizes = [16, 128], strides = [1, 1]} : vector<112x128xf32> to vector<16x128xf32>
    %44 = vector.extract_strided_slice %12 {offsets = [16, 0], sizes = [16, 128], strides = [1, 1]} : vector<112x128xf32> to vector<16x128xf32>
    %45 = arith.mulf %43, %44 : vector<16x128xf32>
    %46 = vector.extract_strided_slice %12 {offsets = [64, 0], sizes = [16, 128], strides = [1, 1]} : vector<112x128xf32> to vector<16x128xf32>
    %47 = arith.mulf %45, %46 : vector<16x128xf32>
    %c48 = arith.constant 48 : index
    %c0_13 = arith.constant 0 : index
    %48 = vector.load %arg4[%c48, %c0_13] : memref<128x1xf32, #tpu.memory_space<vmem>>, vector<16x1xf32>
    %49 = vector.broadcast %48 : vector<16x1xf32> to vector<16x128xf32>
    %50 = arith.mulf %47, %49 : vector<16x128xf32>
    %51 = arith.addf %42, %50 : vector<16x128xf32>
    %52 = vector.extract_strided_slice %12 {offsets = [0, 0], sizes = [16, 128], strides = [1, 1]} : vector<112x128xf32> to vector<16x128xf32>
    %53 = vector.extract_strided_slice %14 {offsets = [32, 0], sizes = [16, 128], strides = [1, 1]} : vector<112x128xf32> to vector<16x128xf32>
    %54 = arith.mulf %52, %53 : vector<16x128xf32>
    %55 = vector.extract_strided_slice %14 {offsets = [80, 0], sizes = [16, 128], strides = [1, 1]} : vector<112x128xf32> to vector<16x128xf32>
    %56 = arith.mulf %54, %55 : vector<16x128xf32>
    %c64 = arith.constant 64 : index
    %c0_14 = arith.constant 0 : index
    %57 = vector.load %arg4[%c64, %c0_14] : memref<128x1xf32, #tpu.memory_space<vmem>>, vector<16x1xf32>
    %58 = vector.broadcast %57 : vector<16x1xf32> to vector<16x128xf32>
    %59 = arith.mulf %56, %58 : vector<16x128xf32>
    %60 = arith.addf %51, %59 : vector<16x128xf32>
    %61 = vector.extract_strided_slice %12 {offsets = [0, 0], sizes = [16, 128], strides = [1, 1]} : vector<112x128xf32> to vector<16x128xf32>
    %62 = vector.extract_strided_slice %14 {offsets = [32, 0], sizes = [16, 128], strides = [1, 1]} : vector<112x128xf32> to vector<16x128xf32>
    %63 = arith.mulf %61, %62 : vector<16x128xf32>
    %64 = vector.extract_strided_slice %12 {offsets = [80, 0], sizes = [16, 128], strides = [1, 1]} : vector<112x128xf32> to vector<16x128xf32>
    %65 = arith.mulf %63, %64 : vector<16x128xf32>
    %c80 = arith.constant 80 : index
    %c0_15 = arith.constant 0 : index
    %66 = vector.load %arg4[%c80, %c0_15] : memref<128x1xf32, #tpu.memory_space<vmem>>, vector<16x1xf32>
    %67 = vector.broadcast %66 : vector<16x1xf32> to vector<16x128xf32>
    %68 = arith.mulf %65, %67 : vector<16x128xf32>
    %69 = arith.addf %60, %68 : vector<16x128xf32>
    %70 = vector.extract_strided_slice %12 {offsets = [0, 0], sizes = [16, 128], strides = [1, 1]} : vector<112x128xf32> to vector<16x128xf32>
    %71 = vector.extract_strided_slice %12 {offsets = [32, 0], sizes = [16, 128], strides = [1, 1]} : vector<112x128xf32> to vector<16x128xf32>
    %72 = arith.mulf %70, %71 : vector<16x128xf32>
    %73 = vector.extract_strided_slice %14 {offsets = [96, 0], sizes = [16, 128], strides = [1, 1]} : vector<112x128xf32> to vector<16x128xf32>
    %74 = arith.mulf %72, %73 : vector<16x128xf32>
    %c96 = arith.constant 96 : index
    %c0_16 = arith.constant 0 : index
    %75 = vector.load %arg4[%c96, %c0_16] : memref<128x1xf32, #tpu.memory_space<vmem>>, vector<16x1xf32>
    %76 = vector.broadcast %75 : vector<16x1xf32> to vector<16x128xf32>
    %77 = arith.mulf %74, %76 : vector<16x128xf32>
    %78 = arith.addf %69, %77 : vector<16x128xf32>
    %79 = vector.extract_strided_slice %12 {offsets = [0, 0], sizes = [16, 128], strides = [1, 1]} : vector<112x128xf32> to vector<16x128xf32>
    %80 = vector.extract_strided_slice %12 {offsets = [32, 0], sizes = [16, 128], strides = [1, 1]} : vector<112x128xf32> to vector<16x128xf32>
    %81 = arith.mulf %79, %80 : vector<16x128xf32>
    %82 = vector.extract_strided_slice %12 {offsets = [96, 0], sizes = [16, 128], strides = [1, 1]} : vector<112x128xf32> to vector<16x128xf32>
    %83 = arith.mulf %81, %82 : vector<16x128xf32>
    %c112 = arith.constant 112 : index
    %c0_17 = arith.constant 0 : index
    %84 = vector.load %arg4[%c112, %c0_17] : memref<128x1xf32, #tpu.memory_space<vmem>>, vector<16x1xf32>
    %85 = vector.broadcast %84 : vector<16x1xf32> to vector<16x128xf32>
    %86 = arith.mulf %83, %85 : vector<16x128xf32>
    %87 = arith.addf %78, %86 : vector<16x128xf32>
    %cst_18 = arith.constant dense<0.000000e+00> : vector<128xf32>
    %88 = vector.multi_reduction <add>, %87, %cst_18 [0] : vector<16x128xf32> to vector<128xf32>
    %89 = vector.shape_cast %88 : vector<128xf32> to vector<1x128xf32>
    %c0_19 = arith.constant 0 : index
    %90 = memref.load %arg5[%c0_19] : memref<1xf32, #tpu.memory_space<smem>>
    %91 = vector.broadcast %90 : f32 to vector<1x128xf32>
    %92 = arith.addf %89, %91 : vector<1x128xf32>
    %c0_20 = arith.constant 0 : index
    %c0_21 = arith.constant 0 : index
    %93 = vector.load %arg6[%c0_20, %c0_21] : memref<1x128xf32, #tpu.memory_space<vmem>>, vector<1x128xf32>
    tpu.vector_store %arg6[%c0_20, %c0_21], %92 {strides = array<i32>} : memref<1x128xf32, #tpu.memory_space<vmem>>, vector<1x128xf32>,
    return
  }
  func.func @transform_0(%arg0: i32) -> (i32, i32) {
    %c0_i32 = arith.constant 0 : i32
    %c0_i32_0 = arith.constant 0 : i32
    return %c0_i32, %arg0 : i32, i32
  }
  func.func @transform_1(%arg0: i32) -> (i32, i32) {
    %c0_i32 = arith.constant 0 : i32
    %c0_i32_0 = arith.constant 0 : i32
    %c0_i32_1 = arith.constant 0 : i32
    return %c0_i32, %c0_i32_0 : i32, i32
  }
  func.func @transform_2(%arg0: i32) -> (i32, i32) {
    %c0_i32 = arith.constant 0 : i32
    %c0_i32_0 = arith.constant 0 : i32
    %c0_i32_1 = arith.constant 0 : i32
    return %c0_i32, %c0_i32_0 : i32, i32
  }
  func.func @transform_3(%arg0: i32) -> (i32, i32) {
    %c0_i32 = arith.constant 0 : i32
    %c0_i32_0 = arith.constant 0 : i32
    %c0_i32_1 = arith.constant 0 : i32
    return %c0_i32, %c0_i32_0 : i32, i32
  }
  func.func @transform_4(%arg0: i32) -> i32 {
    %c0_i32 = arith.constant 0 : i32
    %c0_i32_0 = arith.constant 0 : i32
    return %c0_i32 : i32
  }
  func.func @transform_5(%arg0: i32) -> (i32, i32) {
    %c0_i32 = arith.constant 0 : i32
    %c0_i32_0 = arith.constant 0 : i32
    return %c0_i32, %arg0 : i32, i32
  }
}

</mosaic_0001>

<llo_original>
// kernel: tpu_custom_call.1
$region0: #{tpu_custom_call.1}
  #allocation0 [shape = 'u32[]', space=smem, size = 0x4, offset = 0x4, fixed_abs, tag = 'smem constant byte address 0x4 - core index']
  #allocation1 [shape = 'u32[144,128]{1,0:T(1,128)}', space=vmem, size = 0x12000, scoped, tag = 'internal scratch']
  #allocation2 [shape = 'f32[1]{0:T(128)S(6)}', space=smem, size = 0x200, scoped, tag = 'scoped memory for tpu_custom_call.1']
  %s0 = inlined_call_operand.vmem [shape: f32[8,128], index: 0, kind: input, shape index: {}]
  %s1 = inlined_call_operand.vmem [shape: f32[112,8], index: 1, kind: input, shape index: {}]
  %s2 = inlined_call_operand.vmem [shape: f32[112,1], index: 2, kind: input, shape index: {}]
  %s3 = inlined_call_operand.vmem [shape: f32[128,1], index: 3, kind: input, shape index: {}]
  %s4 = inlined_call_operand.<no memory space> [shape: f32[1], index: 4, kind: input, shape index: {}]
  %s5 = inlined_call_operand.hbm [shape: f32[1,128], index: 5, kind: output, shape index: {}]
  %s6 = sld [smem:[#allocation0]]
  $region30: #{tpu_custom_call.1} parent=0
    _
  %s8 = ssub.s32 1, %s6
  %s9 = scalar_select 0, %s8, %s6
  %10 = sst [smem:[#allocation2]] %s4
  $region1: #{tpu_custom_call.1} parent=0
    #allocation3 [shape = 'u8[512]{0}', space=vmem, size = 0x400, scoped, tag = 'output window, operand 0, single buffered']
    #allocation4 [shape = 's32[1]{0}', space=sflag, size = 0x4, scoped, tag = 'scoped memory for tpu_custom_call.1']
    %11 = vsyncpa [#allocation4], 0
    // Predicated region
    $region2: #{tpu_custom_call.1} parent=1 // pred_check
      _
    $region3: #{tpu_custom_call.1} parent=1 // pred_check_branch
      %13 = sbr.rel (0) target = $region5
    $region4: #{tpu_custom_call.1} parent=1 // pred_region
      _
    $region5: #{tpu_custom_call.1} parent=1 // pred_fallthru
      _
    // Predicated region
    $region6: #{tpu_custom_call.1} parent=1 // pred_check
      _
    $region7: #{tpu_custom_call.1} parent=1 // pred_check_branch
      %15 = sbr.rel (0) target = $region9
    $region8: #{tpu_custom_call.1} parent=1 // pred_region
      _
    $region9: #{tpu_custom_call.1} parent=1 // pred_fallthru
      _
    // Predicated region
    $region10: #{tpu_custom_call.1} parent=1 // pred_check
      _
    $region11: #{tpu_custom_call.1} parent=1 // pred_check_branch
      %17 = sbr.rel (0) target = $region13
    $region12: #{tpu_custom_call.1} parent=1 // pred_region
      _
    $region13: #{tpu_custom_call.1} parent=1 // pred_fallthru
      _
    // Predicated region
    $region14: #{tpu_custom_call.1} parent=1 // pred_check
      _
    $region15: #{tpu_custom_call.1} parent=1 // pred_check_branch
      %19 = sbr.rel (0) target = $region17
    $region16: #{tpu_custom_call.1} parent=1 // pred_region
      _
    $region17: #{tpu_custom_call.1} parent=1 // pred_fallthru
      _
    // Predicated region
    $region18: #{tpu_custom_call.1} parent=1 // pred_check
      _
    $region19: #{tpu_custom_call.1} parent=1 // pred_check_branch
      %21 = sbr.rel (0) target = $region21
    $region20: #{tpu_custom_call.1} parent=1 // pred_region
      _
    $region21: #{tpu_custom_call.1} parent=1 // pred_fallthru
      _
    %v23 = vld [vmem:[%s1] sm:$0xff]
    %v24 = vld [vmem:[%s1 + $0x8] sm:$0xff]
    %v25 = vld [vmem:[%s1 + $0x10] sm:$0xff]
    %v26 = vld [vmem:[%s1 + $0x18] sm:$0xff]
    %v27 = vld [vmem:[%s1 + $0x20] sm:$0xff]
    %v28 = vld [vmem:[%s1 + $0x28] sm:$0xff]
    %v29 = vld [vmem:[%s1 + $0x30] sm:$0xff]
    %v30 = vld [vmem:[%s1 + $0x38] sm:$0xff]
    %v31 = vld [vmem:[%s1 + $0x40] sm:$0xff]
    %v32 = vld [vmem:[%s1 + $0x48] sm:$0xff]
    %v33 = vld [vmem:[%s1 + $0x50] sm:$0xff]
    %v34 = vld [vmem:[%s1 + $0x58] sm:$0xff]
    %v35 = vld [vmem:[%s1 + $0x60] sm:$0xff]
    %v36 = vld [vmem:[%s1 + $0x68] sm:$0xff]
    %v37 = vpack.c.bf16 %v24, %v23
    %v38 = vpack.c.bf16 %v26, %v25
    %v39 = vpack.c.bf16 %v28, %v27
    %v40 = vpack.c.bf16 %v30, %v29
    %v41 = vpack.c.bf16 %v32, %v31
    %v42 = vpack.c.bf16 %v34, %v33
    %v43 = vpack.c.bf16 %v36, %v35
    %v44 = vld [vmem:[%s0] sm:$0xff]
    %v45 = vpack.c.bf16 %v44, %v44
    %v46 = vld [vmem:[%s2] sm:$0xff]
    %v47 = vld [vmem:[%s2 + $0x8] sm:$0xff]
    %v48 = vld [vmem:[%s2 + $0x10] sm:$0xff]
    %v49 = vld [vmem:[%s2 + $0x18] sm:$0xff]
    %v50 = vld [vmem:[%s2 + $0x20] sm:$0xff]
    %v51 = vld [vmem:[%s2 + $0x28] sm:$0xff]
    %v52 = vld [vmem:[%s2 + $0x30] sm:$0xff]
    %v53 = vld [vmem:[%s2 + $0x38] sm:$0xff]
    %v54 = vld [vmem:[%s2 + $0x40] sm:$0xff]
    %v55 = vld [vmem:[%s2 + $0x48] sm:$0xff]
    %v56 = vld [vmem:[%s2 + $0x50] sm:$0xff]
    %v57 = vld [vmem:[%s2 + $0x58] sm:$0xff]
    %v58 = vld [vmem:[%s2 + $0x60] sm:$0xff]
    %v59 = vld [vmem:[%s2 + $0x68] sm:$0xff]
    %61 = vset.pattern.permute.xlu0 0
    %62 = vperm.xlu0 %61, %v46
    %v63 = vpop.permute.xlu0 %62
    %66 = vset.pattern.permute.xlu0 0
    %67 = vperm.xlu0 %66, %v47
    %v68 = vpop.permute.xlu0 %67
    %71 = vset.pattern.permute.xlu0 0
    %72 = vperm.xlu0 %71, %v48
    %v73 = vpop.permute.xlu0 %72
    %76 = vset.pattern.permute.xlu0 0
    %77 = vperm.xlu0 %76, %v49
    %v78 = vpop.permute.xlu0 %77
    %81 = vset.pattern.permute.xlu0 0
    %82 = vperm.xlu0 %81, %v50
    %v83 = vpop.permute.xlu0 %82
    %86 = vset.pattern.permute.xlu0 0
    %87 = vperm.xlu0 %86, %v51
    %v88 = vpop.permute.xlu0 %87
    %91 = vset.pattern.permute.xlu0 0
    %92 = vperm.xlu0 %91, %v52
    %v93 = vpop.permute.xlu0 %92
    %96 = vset.pattern.permute.xlu0 0
    %97 = vperm.xlu0 %96, %v53
    %v98 = vpop.permute.xlu0 %97
    %101 = vset.pattern.permute.xlu0 0
    %102 = vperm.xlu0 %101, %v54
    %v103 = vpop.permute.xlu0 %102
    %106 = vset.pattern.permute.xlu0 0
    %107 = vperm.xlu0 %106, %v55
    %v108 = vpop.permute.xlu0 %107
    %111 = vset.pattern.permute.xlu0 0
    %112 = vperm.xlu0 %111, %v56
    %v113 = vpop.permute.xlu0 %112
    %116 = vset.pattern.permute.xlu0 0
    %117 = vperm.xlu0 %116, %v57
    %v118 = vpop.permute.xlu0 %117
    %121 = vset.pattern.permute.xlu0 0
    %122 = vperm.xlu0 %121, %v58
    %v123 = vpop.permute.xlu0 %122
    %126 = vset.pattern.permute.xlu0 0
    %127 = vperm.xlu0 %126, %v59
    %v128 = vpop.permute.xlu0 %127
    %vm130 = vcmask 64512
    %v132 = vsel %vm130, %v37, 0
    %v135 = vsel %vm130, %v38, 0
    %v138 = vsel %vm130, %v39, 0
    %v141 = vsel %vm130, %v40, 0
    %v144 = vsel %vm130, %v41, 0
    %v147 = vsel %vm130, %v42, 0
    %v150 = vsel %vm130, %v43, 0
    %vm152 = vcmask 1043456
    %v154 = vsel %vm152, %v45, 0
    %156 = vmatprep.subr.bf16.mxu0 0
    %157 = vmatpush1.bf16.msra.mxu0 %v154
    %158 = vmatprep.subr.bf16.mxu0 0
    %159 = vmatpush1.bf16.msra.mxu0 0
    %160 = vmatprep.subr.bf16.mxu0 0
    %161 = vmatpush1.bf16.msra.mxu0 0
    %162 = vmatprep.subr.bf16.mxu0 0
    %163 = vmatpush1.bf16.msra.mxu0 0
    %164 = vmatprep.subr.bf16.mxu0 0
    %165 = vmatpush1.bf16.msra.mxu0 0
    %166 = vmatprep.subr.bf16.mxu0 0
    %167 = vmatpush1.bf16.msra.mxu0 0
    %168 = vmatprep.subr.bf16.mxu0 0
    %169 = vmatpush1.bf16.msra.mxu0 0
    %170 = vmatprep.subr.bf16.mxu0 0
    %171 = vmatpush1.bf16.msra.mxu0 0
    %172 = vmatprep.subr.bf16.mxu0 0
    %173 = vmatpush1.bf16.msra.mxu0 0
    %174 = vmatprep.subr.bf16.mxu0 0
    %175 = vmatpush1.bf16.msra.mxu0 0
    %176 = vmatprep.subr.bf16.mxu0 0
    %177 = vmatpush1.bf16.msra.mxu0 0
    %178 = vmatprep.subr.bf16.mxu0 0
    %179 = vmatpush1.bf16.msra.mxu0 0
    %180 = vmatprep.subr.bf16.mxu0 0
    %181 = vmatpush1.bf16.msra.mxu0 0
    %182 = vmatprep.subr.bf16.mxu0 0
    %183 = vmatpush1.bf16.msra.mxu0 0
    %184 = vmatprep.subr.bf16.mxu0 0
    %185 = vmatpush1.bf16.msra.mxu0 0
    %186 = vmatprep.subr.bf16.mxu0 0
    %187 = vmatpush1.bf16.msra.mxu0 0
    %188 = vmatprep.mubr.bf16.mxu0 0
    %189 = vmatmul.mubr.bf16.gmra.mrb[0].mxu0 %v132
    %v190 = vpop.f32.mrb[0].mxu0
    %v191 = vadd.f32 %v63, %v190
    %v192 = vpop.f32.mrb[0].mxu0
    %v193 = vpop.f32.mrb[0].mxu0
    %v194 = vadd.f32 %v68, %v193
    %v195 = vpop.f32.mrb[0].mxu0
    %196 = vmatprep.mubr.bf16.mxu0 0
    %197 = vmatmul.mubr.bf16.gmra.mrb[0].mxu0 %v135
    %v198 = vpop.f32.mrb[0].mxu0
    %v199 = vadd.f32 %v73, %v198
    %v200 = vpop.f32.mrb[0].mxu0
    %v201 = vpop.f32.mrb[0].mxu0
    %v202 = vadd.f32 %v78, %v201
    %v203 = vpop.f32.mrb[0].mxu0
    %204 = vmatprep.mubr.bf16.mxu0 0
    %205 = vmatmul.mubr.bf16.gmra.mrb[0].mxu0 %v138
    %v206 = vpop.f32.mrb[0].mxu0
    %v207 = vadd.f32 %v83, %v206
    %v208 = vpop.f32.mrb[0].mxu0
    %v209 = vpop.f32.mrb[0].mxu0
    %v210 = vadd.f32 %v88, %v209
    %v211 = vpop.f32.mrb[0].mxu0
    %212 = vmatprep.mubr.bf16.mxu0 0
    %213 = vmatmul.mubr.bf16.gmra.mrb[0].mxu0 %v141
    %v214 = vpop.f32.mrb[0].mxu0
    %v215 = vadd.f32 %v93, %v214
    %v216 = vpop.f32.mrb[0].mxu0
    %v217 = vpop.f32.mrb[0].mxu0
    %v218 = vadd.f32 %v98, %v217
    %v219 = vpop.f32.mrb[0].mxu0
    %220 = vmatprep.mubr.bf16.mxu0 0
    %221 = vmatmul.mubr.bf16.gmra.mrb[0].mxu0 %v144
    %v222 = vpop.f32.mrb[0].mxu0
    %v223 = vadd.f32 %v103, %v222
    %v224 = vpop.f32.mrb[0].mxu0
    %v225 = vpop.f32.mrb[0].mxu0
    %v226 = vadd.f32 %v108, %v225
    %v227 = vpop.f32.mrb[0].mxu0
    %228 = vmatprep.mubr.bf16.mxu0 0
    %229 = vmatmul.mubr.bf16.gmra.mrb[0].mxu0 %v147
    %v230 = vpop.f32.mrb[0].mxu0
    %v231 = vadd.f32 %v113, %v230
    %v232 = vpop.f32.mrb[0].mxu0
    %v233 = vpop.f32.mrb[0].mxu0
    %v234 = vadd.f32 %v118, %v233
    %v235 = vpop.f32.mrb[0].mxu0
    %236 = vmatprep.mubr.bf16.mxu0 0
    %237 = vmatmul.mubr.bf16.gmra.mrb[0].mxu0 %v150
    %v238 = vpop.f32.mrb[0].mxu0
    %v239 = vadd.f32 %v123, %v238
    %v240 = vpop.f32.mrb[0].mxu0
    %v241 = vpop.f32.mrb[0].mxu0
    %v242 = vadd.f32 %v128, %v241
    %v243 = vpop.f32.mrb[0].mxu0
    %244 = vdwg.mxu0
    %v245 = vtanh.pop %v191
    %v246 = vtanh.pop %v194
    %v247 = vtanh.pop %v199
    %v248 = vtanh.pop %v202
    %v249 = vtanh.pop %v207
    %v250 = vtanh.pop %v210
    %v251 = vtanh.pop %v215
    %v252 = vtanh.pop %v218
    %v253 = vtanh.pop %v223
    %v254 = vtanh.pop %v226
    %v255 = vtanh.pop %v231
    %v256 = vtanh.pop %v234
    %v257 = vtanh.pop %v239
    %v258 = vtanh.pop %v242
    %v259 = vmul.f32 %v245, 0.5
    %v260 = vmul.f32 %v246, 0.5
    %v261 = vmul.f32 %v247, 0.5
    %v262 = vmul.f32 %v248, 0.5
    %v263 = vmul.f32 %v249, 0.5
    %v264 = vmul.f32 %v250, 0.5
    %v265 = vmul.f32 %v251, 0.5
    %v266 = vmul.f32 %v252, 0.5
    %v267 = vmul.f32 %v253, 0.5
    %v268 = vmul.f32 %v254, 0.5
    %v269 = vmul.f32 %v255, 0.5
    %v270 = vmul.f32 %v256, 0.5
    %v271 = vmul.f32 %v257, 0.5
    %v272 = vmul.f32 %v258, 0.5
    %v273 = vadd.f32 %v259, 0.5
    %v274 = vadd.f32 %v260, 0.5
    %v275 = vadd.f32 %v261, 0.5
    %v276 = vadd.f32 %v262, 0.5
    %v277 = vadd.f32 %v263, 0.5
    %v278 = vadd.f32 %v264, 0.5
    %v279 = vadd.f32 %v265, 0.5
    %v280 = vadd.f32 %v266, 0.5
    %v281 = vadd.f32 %v267, 0.5
    %v282 = vadd.f32 %v268, 0.5
    %v283 = vadd.f32 %v269, 0.5
    %v284 = vadd.f32 %v270, 0.5
    %v285 = vadd.f32 %v271, 0.5
    %v286 = vadd.f32 %v272, 0.5
    %v287 = vsub.f32 0.5, %v259
    %v288 = vsub.f32 0.5, %v260
    %v289 = vsub.f32 0.5, %v261
    %v290 = vsub.f32 0.5, %v262
    %v291 = vsub.f32 0.5, %v263
    %v292 = vsub.f32 0.5, %v264
    %v293 = vsub.f32 0.5, %v265
    %v294 = vsub.f32 0.5, %v266
    %v295 = vsub.f32 0.5, %v267
    %v296 = vsub.f32 0.5, %v268
    %v297 = vsub.f32 0.5, %v269
    %v298 = vsub.f32 0.5, %v270
    %v299 = vsub.f32 0.5, %v271
    %v300 = vsub.f32 0.5, %v272
    %v301 = vmul.f32 %v287, %v289
    %v302 = vmul.f32 %v288, %v290
    %v303 = vmul.f32 %v301, %v293
    %v304 = vmul.f32 %v302, %v294
    %v305 = vld [vmem:[%s3] sm:$0xff]
    %v306 = vld [vmem:[%s3 + $0x8] sm:$0xff]
    %308 = vset.pattern.permute.xlu0 0
    %309 = vperm.xlu0 %308, %v305
    %v310 = vpop.permute.xlu0 %309
    %313 = vset.pattern.permute.xlu0 0
    %314 = vperm.xlu0 %313, %v306
    %v315 = vpop.permute.xlu0 %314
    %v317 = vmul.f32 %v303, %v310
    %v318 = vmul.f32 %v304, %v315
    %v319 = vadd.f32 %v317, 0.0
    %v320 = vadd.f32 %v318, 0.0
    %v321 = vmul.f32 %v301, %v279
    %v322 = vmul.f32 %v302, %v280
    %v323 = vld [vmem:[%s3 + $0x10] sm:$0xff]
    %v324 = vld [vmem:[%s3 + $0x18] sm:$0xff]
    %326 = vset.pattern.permute.xlu0 0
    %327 = vperm.xlu0 %326, %v323
    %v328 = vpop.permute.xlu0 %327
    %331 = vset.pattern.permute.xlu0 0
    %332 = vperm.xlu0 %331, %v324
    %v333 = vpop.permute.xlu0 %332
    %v335 = vmul.f32 %v321, %v328
    %v336 = vmul.f32 %v322, %v333
    %v337 = vadd.f32 %v319, %v335
    %v338 = vadd.f32 %v320, %v336
    %v339 = vmul.f32 %v287, %v275
    %v340 = vmul.f32 %v288, %v276
    %v341 = vmul.f32 %v339, %v295
    %v342 = vmul.f32 %v340, %v296
    %v343 = vld [vmem:[%s3 + $0x20] sm:$0xff]
    %v344 = vld [vmem:[%s3 + $0x28] sm:$0xff]
    %346 = vset.pattern.permute.xlu0 0
    %347 = vperm.xlu0 %346, %v343
    %v348 = vpop.permute.xlu0 %347
    %351 = vset.pattern.permute.xlu0 0
    %352 = vperm.xlu0 %351, %v344
    %v353 = vpop.permute.xlu0 %352
    %v355 = vmul.f32 %v341, %v348
    %v356 = vmul.f32 %v342, %v353
    %v357 = vadd.f32 %v337, %v355
    %v358 = vadd.f32 %v338, %v356
    %v359 = vmul.f32 %v339, %v281
    %v360 = vmul.f32 %v340, %v282
    %v361 = vld [vmem:[%s3 + $0x30] sm:$0xff]
    %v362 = vld [vmem:[%s3 + $0x38] sm:$0xff]
    %364 = vset.pattern.permute.xlu0 0
    %365 = vperm.xlu0 %364, %v361
    %v366 = vpop.permute.xlu0 %365
    %369 = vset.pattern.permute.xlu0 0
    %370 = vperm.xlu0 %369, %v362
    %v371 = vpop.permute.xlu0 %370
    %v373 = vmul.f32 %v359, %v366
    %v374 = vmul.f32 %v360, %v371
    %v375 = vadd.f32 %v357, %v373
    %v376 = vadd.f32 %v358, %v374
    %v377 = vmul.f32 %v273, %v291
    %v378 = vmul.f32 %v274, %v292
    %v379 = vmul.f32 %v377, %v297
    %v380 = vmul.f32 %v378, %v298
    %v381 = vld [vmem:[%s3 + $0x40] sm:$0xff]
    %v382 = vld [vmem:[%s3 + $0x48] sm:$0xff]
    %384 = vset.pattern.permute.xlu0 0
    %385 = vperm.xlu0 %384, %v381
    %v386 = vpop.permute.xlu0 %385
    %389 = vset.pattern.permute.xlu0 0
    %390 = vperm.xlu0 %389, %v382
    %v391 = vpop.permute.xlu0 %390
    %v393 = vmul.f32 %v379, %v386
    %v394 = vmul.f32 %v380, %v391
    %v395 = vadd.f32 %v375, %v393
    %v396 = vadd.f32 %v376, %v394
    %v397 = vmul.f32 %v377, %v283
    %v398 = vmul.f32 %v378, %v284
    %v399 = vld [vmem:[%s3 + $0x50] sm:$0xff]
    %v400 = vld [vmem:[%s3 + $0x58] sm:$0xff]
    %402 = vset.pattern.permute.xlu0 0
    %403 = vperm.xlu0 %402, %v399
    %v404 = vpop.permute.xlu0 %403
    %407 = vset.pattern.permute.xlu0 0
    %408 = vperm.xlu0 %407, %v400
    %v409 = vpop.permute.xlu0 %408
    %v411 = vmul.f32 %v397, %v404
    %v412 = vmul.f32 %v398, %v409
    %v413 = vadd.f32 %v395, %v411
    %v414 = vadd.f32 %v396, %v412
    %v415 = vmul.f32 %v273, %v277
    %v416 = vmul.f32 %v274, %v278
    %v417 = vmul.f32 %v415, %v299
    %v418 = vmul.f32 %v416, %v300
    %v419 = vld [vmem:[%s3 + $0x60] sm:$0xff]
    %v420 = vld [vmem:[%s3 + $0x68] sm:$0xff]
    %422 = vset.pattern.permute.xlu0 0
    %423 = vperm.xlu0 %422, %v419
    %v424 = vpop.permute.xlu0 %423
    %427 = vset.pattern.permute.xlu0 0
    %428 = vperm.xlu0 %427, %v420
    %v429 = vpop.permute.xlu0 %428
    %v431 = vmul.f32 %v417, %v424
    %v432 = vmul.f32 %v418, %v429
    %v433 = vadd.f32 %v413, %v431
    %v434 = vadd.f32 %v414, %v432
    %v435 = vmul.f32 %v415, %v285
    %v436 = vmul.f32 %v416, %v286
    %v437 = vld [vmem:[%s3 + $0x70] sm:$0xff]
    %v438 = vld [vmem:[%s3 + $0x78] sm:$0xff]
    %440 = vset.pattern.permute.xlu0 0
    %441 = vperm.xlu0 %440, %v437
    %v442 = vpop.permute.xlu0 %441
    %445 = vset.pattern.permute.xlu0 0
    %446 = vperm.xlu0 %445, %v438
    %v447 = vpop.permute.xlu0 %446
    %v449 = vmul.f32 %v435, %v442
    %v450 = vmul.f32 %v436, %v447
    %v451 = vadd.f32 %v433, %v449
    %v452 = vadd.f32 %v434, %v450
    %v453 = vadd.f32 %v451, %v452
    %v454 = vrot.slane %v453, 4
    %v455 = vadd.f32 %v453, %v454
    %v456 = vrot.slane %v455, 2
    %v457 = vadd.f32 %v455, %v456
    %v458 = vrot.slane %v457, 1
    %v459 = vadd.f32 %v457, %v458
    %s460 = sld [smem:[#allocation2]]
    %v461 = vstv %s460
    %v462 = vadd.f32 %v459, %v461
    %463 = vst [vmem:[#allocation3] sm:$0x1] %v462
    // Predicated region
    $region22: #{tpu_custom_call.1} parent=1 // pred_check
      _
    $region23: #{tpu_custom_call.1} parent=1 // pred_check_branch
      %465 = sbr.rel (0) target = $region25
    $region24: #{tpu_custom_call.1} parent=1 // pred_region
      %s467 = ssub.s32 16, 16
      %468 = vsyncadd [#allocation4], %s467
      %s470 = sshll.u32 [#allocation3], 4
      %s471 = int_to_ptr.vmem [resolvable:$true] %s470
      %473 = dma.vmem_to_hbm [thread:$0]  %s471, 16, %s5, [#allocation4]
    $region25: #{tpu_custom_call.1} parent=1 // pred_fallthru
      _
    // Predicated region
    $region26: #{tpu_custom_call.1} parent=1 // pred_check
      _
    $region27: #{tpu_custom_call.1} parent=1 // pred_check_branch
      %475 = sbr.rel (0) target = $region29
    $region28: #{tpu_custom_call.1} parent=1 // pred_region
      %476 = dma.done [#allocation4], 16
    $region29: #{tpu_custom_call.1} parent=1 // pred_fallthru
      _
    %477 = vsyncpa [#allocation4], 1

</llo_original>
